<compile_context>
chip_gen: v7x
topology: tpu7x:2x2x1
jax: 0.10.0
libtpu: 0.0.40
codegen_flags: <defaults>
</compile_context>

<pallas_src>
import functools

import jax
import jax.numpy as jnp
from jax.experimental import pallas as pl
from jax.experimental.pallas import tpu as pltpu


def _dead_relu_kernel(x_ref, bits_ref, o_ref, *, threshold):
    # alive wherever the raw random bits fall below the integer threshold
    # (threshold = alive_probability * 2^32).
    alive = bits_ref[...] < jnp.uint32(threshold)
    relu_x = jnp.maximum(x_ref[...], 0)
    o_ref[...] = jnp.where(alive, relu_x, jnp.zeros_like(relu_x)).astype(o_ref.dtype)


def dead_relu(x, key, alive_probability=0.9, *, lanes=1024, max_tile_rows=512):
    """DeadReLU forward: relu(x) * (U[0,1) < alive_probability).

    x   : float array of any shape (e.g. NCHW activations).
    key : jax.random key controlling the random mask.
    """
    orig_shape = x.shape
    n = x.size

    # Lane-dense 2-D view: pad flat length so rows is a multiple of 8 and of
    # the tile size; last dim is `lanes` (multiple of 128).
    rows = -(-n // lanes)                       # ceil(n / lanes)
    rows8 = -(-rows // 8) * 8                   # round rows up to multiple of 8
    tile_rows = min(max_tile_rows, rows8)
    rows_padded = -(-rows8 // tile_rows) * tile_rows
    padded_n = rows_padded * lanes

    x_flat = x.reshape(-1)
    if padded_n != n:
        x_flat = jnp.pad(x_flat, (0, padded_n - n))
    x2d = x_flat.reshape(rows_padded, lanes)

    # Fresh random bits per call (matches torch.rand_like semantics).
    bits = jax.random.bits(key, (rows_padded, lanes), dtype=jnp.uint32)

    # Integer threshold: P(bits < threshold) == alive_probability (to 2^-32).
    threshold = int(alive_probability * (1 << 32))
    threshold = max(0, min(threshold, (1 << 32) - 1))

    kernel = functools.partial(_dead_relu_kernel, threshold=threshold)

    itemsize = jnp.dtype(x.dtype).itemsize
    grid = (rows_padded // tile_rows,)

    out2d = pl.pallas_call(
        kernel,
        out_shape=jax.ShapeDtypeStruct((rows_padded, lanes), x.dtype),
        grid=grid,
        in_specs=[
            pl.BlockSpec((tile_rows, lanes), lambda i: (i, 0)),
            pl.BlockSpec((tile_rows, lanes), lambda i: (i, 0)),
        ],
        out_specs=pl.BlockSpec((tile_rows, lanes), lambda i: (i, 0)),
        compiler_params=pltpu.CompilerParams(
            dimension_semantics=("parallel",)),
        cost_estimate=pl.CostEstimate(
            flops=2 * padded_n,
            transcendentals=0,
            bytes_accessed=2 * padded_n * itemsize + 4 * padded_n),
    )(x2d, bits)

    return out2d.reshape(-1)[:n].reshape(orig_shape)


if __name__ == "__main__":
    key = jax.random.PRNGKey(0)
    x_key, mask_key = jax.random.split(key)

    # Small NCHW input consistent with a conv-style activation tensor.
    x = jax.random.normal(x_key, (2, 4, 16, 16), dtype=jnp.float32)

    out = dead_relu(x, mask_key, alive_probability=0.9)
    out = jax.block_until_ready(out)

    # Sanity checks.
    assert out.shape == x.shape
    assert bool(jnp.all(out >= 0))
    # Zero wherever relu(x) is zero.
    assert bool(jnp.all(jnp.where(x <= 0, out == 0, True)))
    # Surviving entries equal x exactly (mask is 0/1, no rescaling).
    surviving = out > 0
    assert bool(jnp.all(jnp.where(surviving, jnp.isclose(out, x), True)))
    # Statistically-certain mask check: with ~1000 positives and p=0.9,
    # some (but not all) positives must be killed.
    pos = x > 0
    killed = jnp.logical_and(pos, out == 0)
    assert bool(jnp.any(killed))
    assert bool(jnp.any(jnp.logical_and(pos, out > 0)))

    print("KERNEL_OK")
</pallas_src>

<mosaic_0001>
module attributes {stable_mosaic.version = 11 : i64} {
  func.func @_dead_relu_kernel(%arg0: i32, %arg1: memref<8x1024xf32, #tpu.memory_space<vmem>>, %arg2: memref<8x1024xi32, #tpu.memory_space<vmem>>, %arg3: memref<8x1024xf32, #tpu.memory_space<vmem>>) attributes {dimension_semantics = [#tpu.dimension_semantics<parallel>], iteration_bounds = array<i64: 1>, scalar_prefetch = 0 : i64, scratch_operands = 0 : i64, tpu.core_type = #tpu.core_type<tc>, window_params = [{transform_indices = @transform_0, window_bounds = array<i64: 8, 1024>}, {transform_indices = @transform_1, window_bounds = array<i64: 8, 1024>}, {transform_indices = @transform_2, window_bounds = array<i64: 8, 1024>}]} {
    %c0 = arith.constant 0 : index
    %c0_0 = arith.constant 0 : index
    %0 = vector.load %arg2[%c0, %c0_0] : memref<8x1024xi32, #tpu.memory_space<vmem>>, vector<8x1024xi32>
    %c-429496730_i32 = arith.constant -429496730 : i32
    %1 = vector.broadcast %c-429496730_i32 : i32 to vector<8x1024xi32>
    %2 = arith.cmpi ult, %0, %1 : vector<8x1024xi32>
    %c0_1 = arith.constant 0 : index
    %c0_2 = arith.constant 0 : index
    %3 = vector.load %arg1[%c0_1, %c0_2] : memref<8x1024xf32, #tpu.memory_space<vmem>>, vector<8x1024xf32>
    %cst = arith.constant 0.000000e+00 : f32
    %4 = vector.broadcast %cst : f32 to vector<8x1024xf32>
    %5 = arith.maximumf %3, %4 : vector<8x1024xf32>
    %cst_3 = arith.constant 0.000000e+00 : f32
    %6 = vector.broadcast %cst_3 : f32 to vector<8x1024xf32>
    %7 = arith.select %2, %5, %6 : vector<8x1024xi1>, vector<8x1024xf32>
    %c0_4 = arith.constant 0 : index
    %c0_5 = arith.constant 0 : index
    %8 = vector.load %arg3[%c0_4, %c0_5] : memref<8x1024xf32, #tpu.memory_space<vmem>>, vector<8x1024xf32>
    tpu.vector_store %arg3[%c0_4, %c0_5], %7 {strides = array<i32>} : memref<8x1024xf32, #tpu.memory_space<vmem>>, vector<8x1024xf32>,
    return
  }
  func.func @transform_0(%arg0: i32) -> (i32, i32) {
    %c0_i32 = arith.constant 0 : i32
    %c0_i32_0 = arith.constant 0 : i32
    return %arg0, %c0_i32 : i32, i32
  }
  func.func @transform_1(%arg0: i32) -> (i32, i32) {
    %c0_i32 = arith.constant 0 : i32
    %c0_i32_0 = arith.constant 0 : i32
    return %arg0, %c0_i32 : i32, i32
  }
  func.func @transform_2(%arg0: i32) -> (i32, i32) {
    %c0_i32 = arith.constant 0 : i32
    %c0_i32_0 = arith.constant 0 : i32
    return %arg0, %c0_i32 : i32, i32
  }
}

</mosaic_0001>

<llo_original>
// kernel: tpu_custom_call.1
$region0: #{tpu_custom_call.1}
  #allocation0 [shape = 'u32[]', space=smem, size = 0x4, offset = 0x4, fixed_abs, tag = 'smem constant byte address 0x4 - core index']
  #allocation1 [shape = 'u32[144,128]{1,0:T(1,128)}', space=vmem, size = 0x12000, scoped, tag = 'internal scratch']
  %s0 = inlined_call_operand.hbm [shape: f32[8,1024], index: 0, kind: input, shape index: {}]
  %s1 = inlined_call_operand.hbm [shape: u32[8,1024], index: 1, kind: input, shape index: {}]
  %s2 = inlined_call_operand.hbm [shape: f32[8,1024], index: 2, kind: output, shape index: {}]
  %s3 = sld [smem:[#allocation0]]
  $region26: #{tpu_custom_call.1} parent=0
    _
  %s5 = ssub.s32 1, %s3
  %s6 = scalar_select 0, %s5, %s3
  $region1: #{tpu_custom_call.1} parent=0
    #allocation2 [shape = 'u8[32768]{0}', space=vmem, size = 0x8000, scoped, tag = 'input window, operand 0, single buffered']
    #allocation3 [shape = 's32[1]{0}', space=sflag, size = 0x4, scoped, tag = 'scoped memory for tpu_custom_call.1']
    #allocation4 [shape = 's32[1]{0}', space=sflag, size = 0x4, scoped, tag = 'scoped memory for tpu_custom_call.1']
    #allocation5 [shape = 'u8[32768]{0}', space=vmem, size = 0x8000, scoped, tag = 'input window, operand 1, single buffered']
    #allocation6 [shape = 's32[1]{0}', space=sflag, size = 0x4, scoped, tag = 'scoped memory for tpu_custom_call.1']
    #allocation7 [shape = 'u8[32768]{0}', space=vmem, size = 0x8000, scoped, tag = 'output window, operand 0, single buffered']
    %7 = vsyncpa [#allocation3], 0
    %8 = vsyncpa [#allocation6], 0
    %9 = vsyncpa [#allocation4], 0
    // Predicated region
    $region2: #{tpu_custom_call.1} parent=1 // pred_check
      _
    $region3: #{tpu_custom_call.1} parent=1 // pred_check_branch
      %11 = sbr.rel (0) target = $region5
    $region4: #{tpu_custom_call.1} parent=1 // pred_region
      %s13 = ssub.s32 1024, 1024
      %14 = vsyncadd [#allocation3], %s13
      %s16 = sshll.u32 [#allocation2], 4
      %s17 = int_to_ptr.vmem [resolvable:$true] %s16
      %19 = dma.hbm_to_vmem [thread:$0]  %s0, 1024, %s17, [#allocation3]
    $region5: #{tpu_custom_call.1} parent=1 // pred_fallthru
      _
    // Predicated region
    $region6: #{tpu_custom_call.1} parent=1 // pred_check
      _
    $region7: #{tpu_custom_call.1} parent=1 // pred_check_branch
      %21 = sbr.rel (0) target = $region9
    $region8: #{tpu_custom_call.1} parent=1 // pred_region
      %s23 = ssub.s32 1024, 1024
      %24 = vsyncadd [#allocation6], %s23
      %s26 = sshll.u32 [#allocation5], 4
      %s27 = int_to_ptr.vmem [resolvable:$true] %s26
      %29 = dma.hbm_to_vmem [thread:$0]  %s1, 1024, %s27, [#allocation6]
    $region9: #{tpu_custom_call.1} parent=1 // pred_fallthru
      _
    // Predicated region
    $region10: #{tpu_custom_call.1} parent=1 // pred_check
      _
    $region11: #{tpu_custom_call.1} parent=1 // pred_check_branch
      %31 = sbr.rel (0) target = $region13
    $region12: #{tpu_custom_call.1} parent=1 // pred_region
      %32 = dma.done [#allocation3], 1024
    $region13: #{tpu_custom_call.1} parent=1 // pred_fallthru
      _
    // Predicated region
    $region14: #{tpu_custom_call.1} parent=1 // pred_check
      _
    $region15: #{tpu_custom_call.1} parent=1 // pred_check_branch
      %34 = sbr.rel (0) target = $region17
    $region16: #{tpu_custom_call.1} parent=1 // pred_region
      %35 = dma.done [#allocation6], 1024
    $region17: #{tpu_custom_call.1} parent=1 // pred_fallthru
      _
    %v36 = vld [vmem:[#allocation5] sm:$0xff]
    %v37 = vld [vmem:[#allocation5 + $0x8] sm:$0xff]
    %v38 = vld [vmem:[#allocation5 + $0x10] sm:$0xff]
    %v39 = vld [vmem:[#allocation5 + $0x18] sm:$0xff]
    %v40 = vld [vmem:[#allocation5 + $0x20] sm:$0xff]
    %v41 = vld [vmem:[#allocation5 + $0x28] sm:$0xff]
    %v42 = vld [vmem:[#allocation5 + $0x30] sm:$0xff]
    %v43 = vld [vmem:[#allocation5 + $0x38] sm:$0xff]
    %vm44 = vcmp.lt.u32.totalorder %v36, 3865470566
    %vm45 = vcmp.lt.u32.totalorder %v37, 3865470566
    %vm46 = vcmp.lt.u32.totalorder %v38, 3865470566
    %vm47 = vcmp.lt.u32.totalorder %v39, 3865470566
    %vm48 = vcmp.lt.u32.totalorder %v40, 3865470566
    %vm49 = vcmp.lt.u32.totalorder %v41, 3865470566
    %vm50 = vcmp.lt.u32.totalorder %v42, 3865470566
    %vm51 = vcmp.lt.u32.totalorder %v43, 3865470566
    %v52 = vld [vmem:[#allocation2] sm:$0xff]
    %v53 = vld [vmem:[#allocation2 + $0x8] sm:$0xff]
    %v54 = vld [vmem:[#allocation2 + $0x10] sm:$0xff]
    %v55 = vld [vmem:[#allocation2 + $0x18] sm:$0xff]
    %v56 = vld [vmem:[#allocation2 + $0x20] sm:$0xff]
    %v57 = vld [vmem:[#allocation2 + $0x28] sm:$0xff]
    %v58 = vld [vmem:[#allocation2 + $0x30] sm:$0xff]
    %v59 = vld [vmem:[#allocation2 + $0x38] sm:$0xff]
    %v60 = vmax.f32 %v52, 0.0
    %v61 = vmax.f32 %v53, 0.0
    %v62 = vmax.f32 %v54, 0.0
    %v63 = vmax.f32 %v55, 0.0
    %v64 = vmax.f32 %v56, 0.0
    %v65 = vmax.f32 %v57, 0.0
    %v66 = vmax.f32 %v58, 0.0
    %v67 = vmax.f32 %v59, 0.0
    %v68 = vsel %vm44, %v60, 0.0
    %v69 = vsel %vm45, %v61, 0.0
    %v70 = vsel %vm46, %v62, 0.0
    %v71 = vsel %vm47, %v63, 0.0
    %v72 = vsel %vm48, %v64, 0.0
    %v73 = vsel %vm49, %v65, 0.0
    %v74 = vsel %vm50, %v66, 0.0
    %v75 = vsel %vm51, %v67, 0.0
    %76 = vst [vmem:[#allocation7] sm:$0xff] %v68
    %77 = vst [vmem:[#allocation7 + $0x8] sm:$0xff] %v69
    %78 = vst [vmem:[#allocation7 + $0x10] sm:$0xff] %v70
    %79 = vst [vmem:[#allocation7 + $0x18] sm:$0xff] %v71
    %80 = vst [vmem:[#allocation7 + $0x20] sm:$0xff] %v72
    %81 = vst [vmem:[#allocation7 + $0x28] sm:$0xff] %v73
    %82 = vst [vmem:[#allocation7 + $0x30] sm:$0xff] %v74
    %83 = vst [vmem:[#allocation7 + $0x38] sm:$0xff] %v75
    // Predicated region
    $region18: #{tpu_custom_call.1} parent=1 // pred_check
      _
    $region19: #{tpu_custom_call.1} parent=1 // pred_check_branch
      %85 = sbr.rel (0) target = $region21
    $region20: #{tpu_custom_call.1} parent=1 // pred_region
      %s87 = ssub.s32 1024, 1024
      %88 = vsyncadd [#allocation4], %s87
      %s90 = sshll.u32 [#allocation7], 4
      %s91 = int_to_ptr.vmem [resolvable:$true] %s90
      %93 = dma.vmem_to_hbm [thread:$0]  %s91, 1024, %s2, [#allocation4]
    $region21: #{tpu_custom_call.1} parent=1 // pred_fallthru
      _
    // Predicated region
    $region22: #{tpu_custom_call.1} parent=1 // pred_check
      _
    $region23: #{tpu_custom_call.1} parent=1 // pred_check_branch
      %95 = sbr.rel (0) target = $region25
    $region24: #{tpu_custom_call.1} parent=1 // pred_region
      %96 = dma.done [#allocation4], 1024
    $region25: #{tpu_custom_call.1} parent=1 // pred_fallthru
      _
    %97 = vsyncpa [#allocation3], 1
    %98 = vsyncpa [#allocation6], 1
    %99 = vsyncpa [#allocation4], 1

</llo_original>
